<compile_context>
chip_gen: v5e
topology: v5e:2x2
jax: 0.10.0
libtpu: 0.0.40
codegen_flags: <defaults>
</compile_context>

<pallas_src>
import functools

import jax
import jax.numpy as jnp
import numpy as np
from jax import lax
from jax.experimental import pallas as pl
from jax.experimental.pallas import tpu as pltpu


def _use_bf16_exp():
    """bf16 exp only on generations whose EUP has a bf16 path (v6e / v7x)."""
    try:
        kind = jax.devices()[0].device_kind.lower()
    except Exception:
        return False
    return ("v6" in kind) or ("v7" in kind)


def _self_attention_kernel(x_ref, wqkv_ref, bqkv_ref, wfc_ref, bfc_ref, o_ref,
                           *, num_heads, bf16_exp):
    _, N, D = x_ref.shape
    hd = D // num_heads

    x = x_ref[0]                                   # (N, D) f32 (kept f32 for the residual)
    xb = x.astype(jnp.bfloat16)                    # single cast per batch step

    # All-head q/k/v in ONE wide matmul; scale already folded into the q columns/bias.
    qkv = jnp.dot(xb, wqkv_ref[...], preferred_element_type=jnp.float32) + bqkv_ref[...]
    qkv = qkv.astype(jnp.bfloat16)                 # (N, 3D), columns = [q_all | k_all | v_all]

    outs = []
    for h in range(num_heads):                     # static loop -> static lane slices
        q = qkv[:, h * hd:(h + 1) * hd]
        k = qkv[:, D + h * hd:D + (h + 1) * hd]
        v = qkv[:, 2 * D + h * hd:2 * D + (h + 1) * hd]

        # Scores: contract the last dims directly -- no materialized k transpose.
        s = lax.dot_general(q, k, dimension_numbers=(((1,), (1,)), ((), ())),
                            preferred_element_type=jnp.float32)         # (N, N) f32
        s = s - jnp.max(s, axis=-1, keepdims=True)

        if bf16_exp:
            p = jnp.exp(s.astype(jnp.bfloat16))                          # bf16 EUP path
            l = jnp.sum(p, axis=-1, keepdims=True, dtype=jnp.float32)    # f32 accumulation
            p_mm = p
        else:
            p = jnp.exp(s)                                               # f32 (v5e-safe)
            l = jnp.sum(p, axis=-1, keepdims=True)
            p_mm = p.astype(jnp.bfloat16)

        # Deferred normalization: PV matmul on unnormalized p, rescale the (N, hd) result.
        o_h = jnp.dot(p_mm, v, preferred_element_type=jnp.float32)       # (N, hd)
        o_h = o_h * pl.reciprocal(l, approx=True)
        outs.append(o_h.astype(jnp.bfloat16))

    o_cat = jnp.concatenate(outs, axis=-1)                               # (N, D) bf16
    y = jnp.dot(o_cat, wfc_ref[...], preferred_element_type=jnp.float32)  # single D-deep fc
    o_ref[0] = (y + bfc_ref[...] + x).astype(o_ref.dtype)


def self_attention_pallas(x, w_qkv, b_qkv, w_fc, b_fc, num_heads):
    """x: (B, N, D); w_qkv: (D, 3D); b_qkv: (3D,); w_fc: (D, D); b_fc: (D,).

    Weights are stored pre-transposed as (in_features, out_features), i.e. nn.Linear.weight.T.
    """
    B, N, D = x.shape
    H = num_heads
    assert D % H == 0
    hd = D // H
    scale = float(hd) ** -0.5

    # --- Wrapper-side parameter re-layout (done once; layout plumbing, not compute) ---
    # qkv Linear output feature f = h*3*hd + c*hd + j (c = 0/1/2 -> q/k/v), matching the
    # PyTorch reshape(B, N, H, 3*hd).chunk(3, -1).  Regroup to [q_heads | k_heads | v_heads]
    # (new column c*D + h*hd + j) and fold the 1/sqrt(hd) scale into the q columns + bias.
    w4 = w_qkv.reshape(D, H, 3, hd).astype(jnp.float32)
    b4 = b_qkv.reshape(H, 3, hd).astype(jnp.float32)
    cscale = jnp.array([scale, 1.0, 1.0], dtype=jnp.float32)
    w4 = w4 * cscale[None, None, :, None]
    b4 = b4 * cscale[None, :, None]
    w_qkv_r = jnp.transpose(w4, (0, 2, 1, 3)).reshape(D, 3 * D).astype(jnp.bfloat16)
    b_qkv_r = jnp.transpose(b4, (1, 0, 2)).reshape(1, 3 * D).astype(jnp.float32)
    # fc consumes concat(head outputs) in the same head-major column order -> unchanged.
    w_fc_b = w_fc.astype(jnp.bfloat16)
    b_fc2 = b_fc.reshape(1, D).astype(jnp.float32)

    kernel = functools.partial(_self_attention_kernel, num_heads=H,
                               bf16_exp=_use_bf16_exp())

    flops = int(B * (2 * N * D * 3 * D          # all-head qkv projection
                     + 2 * H * N * N * hd       # q k^T
                     + 2 * H * N * N * hd       # p @ v
                     + 2 * N * D * D))          # fc
    cost = pl.CostEstimate(
        flops=flops,
        transcendentals=int(B * H * N * N),     # exp
        bytes_accessed=int(2 * B * N * D * 4                     # x in + out (f32)
                           + (3 * D * D + D * D) * 2             # bf16 weights (resident)
                           + (3 * D + D) * 4),                   # f32 biases
    )

    return pl.pallas_call(
        kernel,
        out_shape=jax.ShapeDtypeStruct((B, N, D), x.dtype),
        grid=(B,),
        in_specs=[
            pl.BlockSpec((1, N, D), lambda b: (b, 0, 0)),        # x
            pl.BlockSpec((D, 3 * D), lambda b: (0, 0)),          # w_qkv (grid-resident)
            pl.BlockSpec((1, 3 * D), lambda b: (0, 0)),          # b_qkv (scale folded into q)
            pl.BlockSpec((D, D), lambda b: (0, 0)),              # w_fc (grid-resident)
            pl.BlockSpec((1, D), lambda b: (0, 0)),              # b_fc
        ],
        out_specs=pl.BlockSpec((1, N, D), lambda b: (b, 0, 0)),
        compiler_params=pltpu.CompilerParams(dimension_semantics=("parallel",)),
        cost_estimate=cost,
    )(x, w_qkv_r, b_qkv_r, w_fc_b, b_fc2)


def self_attention_reference(x, w_qkv, b_qkv, w_fc, b_fc, num_heads):
    """Pure-JAX mirror of the PyTorch forward (window_size == N path)."""
    B, N, D = x.shape
    hd = D // num_heads
    qkv = x @ w_qkv + b_qkv[None, None, :]
    qkv = qkv.reshape(B, N, num_heads, 3 * hd)
    q, k, v = qkv[..., :hd], qkv[..., hd:2 * hd], qkv[..., 2 * hd:]
    q, k, v = [jnp.transpose(t, (0, 2, 1, 3)) for t in (q, k, v)]   # (B, H, N, hd)
    s = jnp.einsum('bhqd,bhkd->bhqk', q, k) * (hd ** -0.5)
    p = jax.nn.softmax(s, axis=-1)
    o = jnp.einsum('bhqk,bhkd->bhqd', p, v)
    o = jnp.transpose(o, (0, 2, 1, 3)).reshape(B, N, D)
    return o @ w_fc + b_fc[None, None, :] + x


if __name__ == "__main__":
    B, N, D, H = 2, 16, 32, 8   # batch, num_points, in_dim, num_heads

    key = jax.random.PRNGKey(0)
    kx, kw1, kb1, kw2, kb2 = jax.random.split(key, 5)

    x = jax.random.normal(kx, (B, N, D), dtype=jnp.float32)
    # Deterministic synthetic parameters (nn.Linear(D, 3D) and nn.Linear(D, D)),
    # stored pre-transposed as (in_features, out_features).
    w_qkv = jax.random.normal(kw1, (D, 3 * D), dtype=jnp.float32) * 0.05
    b_qkv = jax.random.normal(kb1, (3 * D,), dtype=jnp.float32) * 0.05
    w_fc = jax.random.normal(kw2, (D, D), dtype=jnp.float32) * 0.05
    b_fc = jax.random.normal(kb2, (D,), dtype=jnp.float32) * 0.05

    out = self_attention_pallas(x, w_qkv, b_qkv, w_fc, b_fc, H)
    out = jax.block_until_ready(out)

    ref = self_attention_reference(x, w_qkv, b_qkv, w_fc, b_fc, H)
    ref = jax.block_until_ready(ref)

    # bf16 matmul inputs + approx reciprocal (+ bf16 exp on v6e/v7x) -> modest tolerance.
    np.testing.assert_allclose(np.asarray(out), np.asarray(ref), rtol=2e-2, atol=2e-2)
    print("KERNEL_OK")
</pallas_src>

<mosaic_0001>
module attributes {stable_mosaic.version = 11 : i64} {
  func.func @_self_attention_kernel(%arg0: i32, %arg1: memref<1x16x32xf32, #tpu.memory_space<vmem>>, %arg2: memref<32x96xbf16, #tpu.memory_space<vmem>>, %arg3: memref<1x96xf32, #tpu.memory_space<vmem>>, %arg4: memref<32x32xbf16, #tpu.memory_space<vmem>>, %arg5: memref<1x32xf32, #tpu.memory_space<vmem>>, %arg6: memref<1x16x32xf32, #tpu.memory_space<vmem>>) attributes {dimension_semantics = [#tpu.dimension_semantics<parallel>], iteration_bounds = array<i64: 2>, scalar_prefetch = 0 : i64, scratch_operands = 0 : i64, tpu.core_type = #tpu.core_type<tc>, window_params = [{transform_indices = @transform_0, window_bounds = array<i64: 1, 16, 32>}, {pipeline_mode = #tpu.pipeline_mode<synchronous>, transform_indices = @transform_1, window_bounds = array<i64: 32, 96>}, {pipeline_mode = #tpu.pipeline_mode<synchronous>, transform_indices = @transform_2, window_bounds = array<i64: 1, 96>}, {pipeline_mode = #tpu.pipeline_mode<synchronous>, transform_indices = @transform_3, window_bounds = array<i64: 32, 32>}, {pipeline_mode = #tpu.pipeline_mode<synchronous>, transform_indices = @transform_4, window_bounds = array<i64: 1, 32>}, {transform_indices = @transform_5, window_bounds = array<i64: 1, 16, 32>}]} {
    %c0 = arith.constant 0 : index
    %c0_0 = arith.constant 0 : index
    %c0_1 = arith.constant 0 : index
    %0 = vector.load %arg1[%c0, %c0_0, %c0_1] : memref<1x16x32xf32, #tpu.memory_space<vmem>>, vector<1x16x32xf32>
    %1 = vector.shape_cast %0 : vector<1x16x32xf32> to vector<16x32xf32>
    %2 = arith.truncf %1 : vector<16x32xf32> to vector<16x32xbf16>
    %c0_2 = arith.constant 0 : index
    %c0_3 = arith.constant 0 : index
    %3 = vector.load %arg2[%c0_2, %c0_3] : memref<32x96xbf16, #tpu.memory_space<vmem>>, vector<32x96xbf16>
    %cst = arith.constant dense<0.000000e+00> : vector<16x96xf32>
    %4 = tpu.matmul %2, %3, %cst {dimension_numbers = #tpu.dot_dimension_numbers<[1], [0], [0], [1], [0, 0, 1, 1], [], []>} : vector<16x32xbf16>, vector<32x96xbf16>, vector<16x96xf32> -> vector<16x96xf32>
    %c0_4 = arith.constant 0 : index
    %c0_5 = arith.constant 0 : index
    %5 = vector.load %arg3[%c0_4, %c0_5] : memref<1x96xf32, #tpu.memory_space<vmem>>, vector<1x96xf32>
    %6 = vector.broadcast %5 : vector<1x96xf32> to vector<16x96xf32>
    %7 = arith.addf %4, %6 : vector<16x96xf32>
    %8 = arith.truncf %7 : vector<16x96xf32> to vector<16x96xbf16>
    %9 = vector.extract_strided_slice %8 {offsets = [0, 0], sizes = [16, 4], strides = [1, 1]} : vector<16x96xbf16> to vector<16x4xbf16>
    %10 = vector.extract_strided_slice %8 {offsets = [0, 32], sizes = [16, 4], strides = [1, 1]} : vector<16x96xbf16> to vector<16x4xbf16>
    %11 = vector.extract_strided_slice %8 {offsets = [0, 64], sizes = [16, 4], strides = [1, 1]} : vector<16x96xbf16> to vector<16x4xbf16>
    %cst_6 = arith.constant dense<0.000000e+00> : vector<16x16xf32>
    %12 = tpu.matmul %9, %10, %cst_6 {dimension_numbers = #tpu.dot_dimension_numbers<[1], [1], [0], [0], [0, 0, 1, 0], [], []>} : vector<16x4xbf16>, vector<16x4xbf16>, vector<16x16xf32> -> vector<16x16xf32>
    %cst_7 = arith.constant dense<0xFF800000> : vector<16xf32>
    %13 = vector.multi_reduction <maximumf>, %12, %cst_7 [1] : vector<16x16xf32> to vector<16xf32>
    %14 = vector.shape_cast %13 : vector<16xf32> to vector<16x1xf32>
    %15 = vector.broadcast %14 : vector<16x1xf32> to vector<16x16xf32>
    %16 = arith.subf %12, %15 : vector<16x16xf32>
    %17 = math.exp %16 : vector<16x16xf32>
    %cst_8 = arith.constant dense<0.000000e+00> : vector<16xf32>
    %18 = vector.multi_reduction <add>, %17, %cst_8 [1] : vector<16x16xf32> to vector<16xf32>
    %19 = vector.shape_cast %18 : vector<16xf32> to vector<16x1xf32>
    %20 = arith.truncf %17 : vector<16x16xf32> to vector<16x16xbf16>
    %cst_9 = arith.constant dense<0.000000e+00> : vector<16x4xf32>
    %21 = tpu.matmul %20, %11, %cst_9 {dimension_numbers = #tpu.dot_dimension_numbers<[1], [0], [0], [1], [0, 0, 1, 1], [], []>} : vector<16x16xbf16>, vector<16x4xbf16>, vector<16x4xf32> -> vector<16x4xf32>
    %22 = tpu.reciprocal %19 {approx = true} : vector<16x1xf32> -> vector<16x1xf32>
    %23 = vector.broadcast %22 : vector<16x1xf32> to vector<16x4xf32>
    %24 = arith.mulf %21, %23 : vector<16x4xf32>
    %25 = arith.truncf %24 : vector<16x4xf32> to vector<16x4xbf16>
    %26 = vector.extract_strided_slice %8 {offsets = [0, 4], sizes = [16, 4], strides = [1, 1]} : vector<16x96xbf16> to vector<16x4xbf16>
    %27 = vector.extract_strided_slice %8 {offsets = [0, 36], sizes = [16, 4], strides = [1, 1]} : vector<16x96xbf16> to vector<16x4xbf16>
    %28 = vector.extract_strided_slice %8 {offsets = [0, 68], sizes = [16, 4], strides = [1, 1]} : vector<16x96xbf16> to vector<16x4xbf16>
    %cst_10 = arith.constant dense<0.000000e+00> : vector<16x16xf32>
    %29 = tpu.matmul %26, %27, %cst_10 {dimension_numbers = #tpu.dot_dimension_numbers<[1], [1], [0], [0], [0, 0, 1, 0], [], []>} : vector<16x4xbf16>, vector<16x4xbf16>, vector<16x16xf32> -> vector<16x16xf32>
    %cst_11 = arith.constant dense<0xFF800000> : vector<16xf32>
    %30 = vector.multi_reduction <maximumf>, %29, %cst_11 [1] : vector<16x16xf32> to vector<16xf32>
    %31 = vector.shape_cast %30 : vector<16xf32> to vector<16x1xf32>
    %32 = vector.broadcast %31 : vector<16x1xf32> to vector<16x16xf32>
    %33 = arith.subf %29, %32 : vector<16x16xf32>
    %34 = math.exp %33 : vector<16x16xf32>
    %cst_12 = arith.constant dense<0.000000e+00> : vector<16xf32>
    %35 = vector.multi_reduction <add>, %34, %cst_12 [1] : vector<16x16xf32> to vector<16xf32>
    %36 = vector.shape_cast %35 : vector<16xf32> to vector<16x1xf32>
    %37 = arith.truncf %34 : vector<16x16xf32> to vector<16x16xbf16>
    %cst_13 = arith.constant dense<0.000000e+00> : vector<16x4xf32>
    %38 = tpu.matmul %37, %28, %cst_13 {dimension_numbers = #tpu.dot_dimension_numbers<[1], [0], [0], [1], [0, 0, 1, 1], [], []>} : vector<16x16xbf16>, vector<16x4xbf16>, vector<16x4xf32> -> vector<16x4xf32>
    %39 = tpu.reciprocal %36 {approx = true} : vector<16x1xf32> -> vector<16x1xf32>
    %40 = vector.broadcast %39 : vector<16x1xf32> to vector<16x4xf32>
    %41 = arith.mulf %38, %40 : vector<16x4xf32>
    %42 = arith.truncf %41 : vector<16x4xf32> to vector<16x4xbf16>
    %43 = vector.extract_strided_slice %8 {offsets = [0, 8], sizes = [16, 4], strides = [1, 1]} : vector<16x96xbf16> to vector<16x4xbf16>
    %44 = vector.extract_strided_slice %8 {offsets = [0, 40], sizes = [16, 4], strides = [1, 1]} : vector<16x96xbf16> to vector<16x4xbf16>
    %45 = vector.extract_strided_slice %8 {offsets = [0, 72], sizes = [16, 4], strides = [1, 1]} : vector<16x96xbf16> to vector<16x4xbf16>
    %cst_14 = arith.constant dense<0.000000e+00> : vector<16x16xf32>
    %46 = tpu.matmul %43, %44, %cst_14 {dimension_numbers = #tpu.dot_dimension_numbers<[1], [1], [0], [0], [0, 0, 1, 0], [], []>} : vector<16x4xbf16>, vector<16x4xbf16>, vector<16x16xf32> -> vector<16x16xf32>
    %cst_15 = arith.constant dense<0xFF800000> : vector<16xf32>
    %47 = vector.multi_reduction <maximumf>, %46, %cst_15 [1] : vector<16x16xf32> to vector<16xf32>
    %48 = vector.shape_cast %47 : vector<16xf32> to vector<16x1xf32>
    %49 = vector.broadcast %48 : vector<16x1xf32> to vector<16x16xf32>
    %50 = arith.subf %46, %49 : vector<16x16xf32>
    %51 = math.exp %50 : vector<16x16xf32>
    %cst_16 = arith.constant dense<0.000000e+00> : vector<16xf32>
    %52 = vector.multi_reduction <add>, %51, %cst_16 [1] : vector<16x16xf32> to vector<16xf32>
    %53 = vector.shape_cast %52 : vector<16xf32> to vector<16x1xf32>
    %54 = arith.truncf %51 : vector<16x16xf32> to vector<16x16xbf16>
    %cst_17 = arith.constant dense<0.000000e+00> : vector<16x4xf32>
    %55 = tpu.matmul %54, %45, %cst_17 {dimension_numbers = #tpu.dot_dimension_numbers<[1], [0], [0], [1], [0, 0, 1, 1], [], []>} : vector<16x16xbf16>, vector<16x4xbf16>, vector<16x4xf32> -> vector<16x4xf32>
    %56 = tpu.reciprocal %53 {approx = true} : vector<16x1xf32> -> vector<16x1xf32>
    %57 = vector.broadcast %56 : vector<16x1xf32> to vector<16x4xf32>
    %58 = arith.mulf %55, %57 : vector<16x4xf32>
    %59 = arith.truncf %58 : vector<16x4xf32> to vector<16x4xbf16>
    %60 = vector.extract_strided_slice %8 {offsets = [0, 12], sizes = [16, 4], strides = [1, 1]} : vector<16x96xbf16> to vector<16x4xbf16>
    %61 = vector.extract_strided_slice %8 {offsets = [0, 44], sizes = [16, 4], strides = [1, 1]} : vector<16x96xbf16> to vector<16x4xbf16>
    %62 = vector.extract_strided_slice %8 {offsets = [0, 76], sizes = [16, 4], strides = [1, 1]} : vector<16x96xbf16> to vector<16x4xbf16>
    %cst_18 = arith.constant dense<0.000000e+00> : vector<16x16xf32>
    %63 = tpu.matmul %60, %61, %cst_18 {dimension_numbers = #tpu.dot_dimension_numbers<[1], [1], [0], [0], [0, 0, 1, 0], [], []>} : vector<16x4xbf16>, vector<16x4xbf16>, vector<16x16xf32> -> vector<16x16xf32>
    %cst_19 = arith.constant dense<0xFF800000> : vector<16xf32>
    %64 = vector.multi_reduction <maximumf>, %63, %cst_19 [1] : vector<16x16xf32> to vector<16xf32>
    %65 = vector.shape_cast %64 : vector<16xf32> to vector<16x1xf32>
    %66 = vector.broadcast %65 : vector<16x1xf32> to vector<16x16xf32>
    %67 = arith.subf %63, %66 : vector<16x16xf32>
    %68 = math.exp %67 : vector<16x16xf32>
    %cst_20 = arith.constant dense<0.000000e+00> : vector<16xf32>
    %69 = vector.multi_reduction <add>, %68, %cst_20 [1] : vector<16x16xf32> to vector<16xf32>
    %70 = vector.shape_cast %69 : vector<16xf32> to vector<16x1xf32>
    %71 = arith.truncf %68 : vector<16x16xf32> to vector<16x16xbf16>
    %cst_21 = arith.constant dense<0.000000e+00> : vector<16x4xf32>
    %72 = tpu.matmul %71, %62, %cst_21 {dimension_numbers = #tpu.dot_dimension_numbers<[1], [0], [0], [1], [0, 0, 1, 1], [], []>} : vector<16x16xbf16>, vector<16x4xbf16>, vector<16x4xf32> -> vector<16x4xf32>
    %73 = tpu.reciprocal %70 {approx = true} : vector<16x1xf32> -> vector<16x1xf32>
    %74 = vector.broadcast %73 : vector<16x1xf32> to vector<16x4xf32>
    %75 = arith.mulf %72, %74 : vector<16x4xf32>
    %76 = arith.truncf %75 : vector<16x4xf32> to vector<16x4xbf16>
    %77 = vector.extract_strided_slice %8 {offsets = [0, 16], sizes = [16, 4], strides = [1, 1]} : vector<16x96xbf16> to vector<16x4xbf16>
    %78 = vector.extract_strided_slice %8 {offsets = [0, 48], sizes = [16, 4], strides = [1, 1]} : vector<16x96xbf16> to vector<16x4xbf16>
    %79 = vector.extract_strided_slice %8 {offsets = [0, 80], sizes = [16, 4], strides = [1, 1]} : vector<16x96xbf16> to vector<16x4xbf16>
    %cst_22 = arith.constant dense<0.000000e+00> : vector<16x16xf32>
    %80 = tpu.matmul %77, %78, %cst_22 {dimension_numbers = #tpu.dot_dimension_numbers<[1], [1], [0], [0], [0, 0, 1, 0], [], []>} : vector<16x4xbf16>, vector<16x4xbf16>, vector<16x16xf32> -> vector<16x16xf32>
    %cst_23 = arith.constant dense<0xFF800000> : vector<16xf32>
    %81 = vector.multi_reduction <maximumf>, %80, %cst_23 [1] : vector<16x16xf32> to vector<16xf32>
    %82 = vector.shape_cast %81 : vector<16xf32> to vector<16x1xf32>
    %83 = vector.broadcast %82 : vector<16x1xf32> to vector<16x16xf32>
    %84 = arith.subf %80, %83 : vector<16x16xf32>
    %85 = math.exp %84 : vector<16x16xf32>
    %cst_24 = arith.constant dense<0.000000e+00> : vector<16xf32>
    %86 = vector.multi_reduction <add>, %85, %cst_24 [1] : vector<16x16xf32> to vector<16xf32>
    %87 = vector.shape_cast %86 : vector<16xf32> to vector<16x1xf32>
    %88 = arith.truncf %85 : vector<16x16xf32> to vector<16x16xbf16>
    %cst_25 = arith.constant dense<0.000000e+00> : vector<16x4xf32>
    %89 = tpu.matmul %88, %79, %cst_25 {dimension_numbers = #tpu.dot_dimension_numbers<[1], [0], [0], [1], [0, 0, 1, 1], [], []>} : vector<16x16xbf16>, vector<16x4xbf16>, vector<16x4xf32> -> vector<16x4xf32>
    %90 = tpu.reciprocal %87 {approx = true} : vector<16x1xf32> -> vector<16x1xf32>
    %91 = vector.broadcast %90 : vector<16x1xf32> to vector<16x4xf32>
    %92 = arith.mulf %89, %91 : vector<16x4xf32>
    %93 = arith.truncf %92 : vector<16x4xf32> to vector<16x4xbf16>
    %94 = vector.extract_strided_slice %8 {offsets = [0, 20], sizes = [16, 4], strides = [1, 1]} : vector<16x96xbf16> to vector<16x4xbf16>
    %95 = vector.extract_strided_slice %8 {offsets = [0, 52], sizes = [16, 4], strides = [1, 1]} : vector<16x96xbf16> to vector<16x4xbf16>
    %96 = vector.extract_strided_slice %8 {offsets = [0, 84], sizes = [16, 4], strides = [1, 1]} : vector<16x96xbf16> to vector<16x4xbf16>
    %cst_26 = arith.constant dense<0.000000e+00> : vector<16x16xf32>
    %97 = tpu.matmul %94, %95, %cst_26 {dimension_numbers = #tpu.dot_dimension_numbers<[1], [1], [0], [0], [0, 0, 1, 0], [], []>} : vector<16x4xbf16>, vector<16x4xbf16>, vector<16x16xf32> -> vector<16x16xf32>
    %cst_27 = arith.constant dense<0xFF800000> : vector<16xf32>
    %98 = vector.multi_reduction <maximumf>, %97, %cst_27 [1] : vector<16x16xf32> to vector<16xf32>
    %99 = vector.shape_cast %98 : vector<16xf32> to vector<16x1xf32>
    %100 = vector.broadcast %99 : vector<16x1xf32> to vector<16x16xf32>
    %101 = arith.subf %97, %100 : vector<16x16xf32>
    %102 = math.exp %101 : vector<16x16xf32>
    %cst_28 = arith.constant dense<0.000000e+00> : vector<16xf32>
    %103 = vector.multi_reduction <add>, %102, %cst_28 [1] : vector<16x16xf32> to vector<16xf32>
    %104 = vector.shape_cast %103 : vector<16xf32> to vector<16x1xf32>
    %105 = arith.truncf %102 : vector<16x16xf32> to vector<16x16xbf16>
    %cst_29 = arith.constant dense<0.000000e+00> : vector<16x4xf32>
    %106 = tpu.matmul %105, %96, %cst_29 {dimension_numbers = #tpu.dot_dimension_numbers<[1], [0], [0], [1], [0, 0, 1, 1], [], []>} : vector<16x16xbf16>, vector<16x4xbf16>, vector<16x4xf32> -> vector<16x4xf32>
    %107 = tpu.reciprocal %104 {approx = true} : vector<16x1xf32> -> vector<16x1xf32>
    %108 = vector.broadcast %107 : vector<16x1xf32> to vector<16x4xf32>
    %109 = arith.mulf %106, %108 : vector<16x4xf32>
    %110 = arith.truncf %109 : vector<16x4xf32> to vector<16x4xbf16>
    %111 = vector.extract_strided_slice %8 {offsets = [0, 24], sizes = [16, 4], strides = [1, 1]} : vector<16x96xbf16> to vector<16x4xbf16>
    %112 = vector.extract_strided_slice %8 {offsets = [0, 56], sizes = [16, 4], strides = [1, 1]} : vector<16x96xbf16> to vector<16x4xbf16>
    %113 = vector.extract_strided_slice %8 {offsets = [0, 88], sizes = [16, 4], strides = [1, 1]} : vector<16x96xbf16> to vector<16x4xbf16>
    %cst_30 = arith.constant dense<0.000000e+00> : vector<16x16xf32>
    %114 = tpu.matmul %111, %112, %cst_30 {dimension_numbers = #tpu.dot_dimension_numbers<[1], [1], [0], [0], [0, 0, 1, 0], [], []>} : vector<16x4xbf16>, vector<16x4xbf16>, vector<16x16xf32> -> vector<16x16xf32>
    %cst_31 = arith.constant dense<0xFF800000> : vector<16xf32>
    %115 = vector.multi_reduction <maximumf>, %114, %cst_31 [1] : vector<16x16xf32> to vector<16xf32>
    %116 = vector.shape_cast %115 : vector<16xf32> to vector<16x1xf32>
    %117 = vector.broadcast %116 : vector<16x1xf32> to vector<16x16xf32>
    %118 = arith.subf %114, %117 : vector<16x16xf32>
    %119 = math.exp %118 : vector<16x16xf32>
    %cst_32 = arith.constant dense<0.000000e+00> : vector<16xf32>
    %120 = vector.multi_reduction <add>, %119, %cst_32 [1] : vector<16x16xf32> to vector<16xf32>
    %121 = vector.shape_cast %120 : vector<16xf32> to vector<16x1xf32>
    %122 = arith.truncf %119 : vector<16x16xf32> to vector<16x16xbf16>
    %cst_33 = arith.constant dense<0.000000e+00> : vector<16x4xf32>
    %123 = tpu.matmul %122, %113, %cst_33 {dimension_numbers = #tpu.dot_dimension_numbers<[1], [0], [0], [1], [0, 0, 1, 1], [], []>} : vector<16x16xbf16>, vector<16x4xbf16>, vector<16x4xf32> -> vector<16x4xf32>
    %124 = tpu.reciprocal %121 {approx = true} : vector<16x1xf32> -> vector<16x1xf32>
    %125 = vector.broadcast %124 : vector<16x1xf32> to vector<16x4xf32>
    %126 = arith.mulf %123, %125 : vector<16x4xf32>
    %127 = arith.truncf %126 : vector<16x4xf32> to vector<16x4xbf16>
    %128 = vector.extract_strided_slice %8 {offsets = [0, 28], sizes = [16, 4], strides = [1, 1]} : vector<16x96xbf16> to vector<16x4xbf16>
    %129 = vector.extract_strided_slice %8 {offsets = [0, 60], sizes = [16, 4], strides = [1, 1]} : vector<16x96xbf16> to vector<16x4xbf16>
    %130 = vector.extract_strided_slice %8 {offsets = [0, 92], sizes = [16, 4], strides = [1, 1]} : vector<16x96xbf16> to vector<16x4xbf16>
    %cst_34 = arith.constant dense<0.000000e+00> : vector<16x16xf32>
    %131 = tpu.matmul %128, %129, %cst_34 {dimension_numbers = #tpu.dot_dimension_numbers<[1], [1], [0], [0], [0, 0, 1, 0], [], []>} : vector<16x4xbf16>, vector<16x4xbf16>, vector<16x16xf32> -> vector<16x16xf32>
    %cst_35 = arith.constant dense<0xFF800000> : vector<16xf32>
    %132 = vector.multi_reduction <maximumf>, %131, %cst_35 [1] : vector<16x16xf32> to vector<16xf32>
    %133 = vector.shape_cast %132 : vector<16xf32> to vector<16x1xf32>
    %134 = vector.broadcast %133 : vector<16x1xf32> to vector<16x16xf32>
    %135 = arith.subf %131, %134 : vector<16x16xf32>
    %136 = math.exp %135 : vector<16x16xf32>
    %cst_36 = arith.constant dense<0.000000e+00> : vector<16xf32>
    %137 = vector.multi_reduction <add>, %136, %cst_36 [1] : vector<16x16xf32> to vector<16xf32>
    %138 = vector.shape_cast %137 : vector<16xf32> to vector<16x1xf32>
    %139 = arith.truncf %136 : vector<16x16xf32> to vector<16x16xbf16>
    %cst_37 = arith.constant dense<0.000000e+00> : vector<16x4xf32>
    %140 = tpu.matmul %139, %130, %cst_37 {dimension_numbers = #tpu.dot_dimension_numbers<[1], [0], [0], [1], [0, 0, 1, 1], [], []>} : vector<16x16xbf16>, vector<16x4xbf16>, vector<16x4xf32> -> vector<16x4xf32>
    %141 = tpu.reciprocal %138 {approx = true} : vector<16x1xf32> -> vector<16x1xf32>
    %142 = vector.broadcast %141 : vector<16x1xf32> to vector<16x4xf32>
    %143 = arith.mulf %140, %142 : vector<16x4xf32>
    %144 = arith.truncf %143 : vector<16x4xf32> to vector<16x4xbf16>
    %145 = tpu.concatenate %25, %42, %59, %76, %93, %110, %127, %144 in 1 : vector<16x4xbf16>, vector<16x4xbf16>, vector<16x4xbf16>, vector<16x4xbf16>, vector<16x4xbf16>, vector<16x4xbf16>, vector<16x4xbf16>, vector<16x4xbf16> -> vector<16x32xbf16>
    %c0_38 = arith.constant 0 : index
    %c0_39 = arith.constant 0 : index
    %146 = vector.load %arg4[%c0_38, %c0_39] : memref<32x32xbf16, #tpu.memory_space<vmem>>, vector<32x32xbf16>
    %cst_40 = arith.constant dense<0.000000e+00> : vector<16x32xf32>
    %147 = tpu.matmul %145, %146, %cst_40 {dimension_numbers = #tpu.dot_dimension_numbers<[1], [0], [0], [1], [0, 0, 1, 1], [], []>} : vector<16x32xbf16>, vector<32x32xbf16>, vector<16x32xf32> -> vector<16x32xf32>
    %c0_41 = arith.constant 0 : index
    %c0_42 = arith.constant 0 : index
    %148 = vector.load %arg5[%c0_41, %c0_42] : memref<1x32xf32, #tpu.memory_space<vmem>>, vector<1x32xf32>
    %149 = vector.broadcast %148 : vector<1x32xf32> to vector<16x32xf32>
    %150 = arith.addf %147, %149 : vector<16x32xf32>
    %151 = arith.addf %150, %1 : vector<16x32xf32>
    %c0_43 = arith.constant 0 : index
    %c0_44 = arith.constant 0 : index
    %c0_45 = arith.constant 0 : index
    %152 = vector.load %arg6[%c0_43, %c0_44, %c0_45] : memref<1x16x32xf32, #tpu.memory_space<vmem>>, vector<1x16x32xf32>
    %153 = vector.shape_cast %152 : vector<1x16x32xf32> to vector<16x32xf32>
    %154 = vector.shape_cast %151 : vector<16x32xf32> to vector<1x16x32xf32>
    tpu.vector_store %arg6[%c0_43, %c0_44, %c0_45], %154 {strides = array<i32>} : memref<1x16x32xf32, #tpu.memory_space<vmem>>, vector<1x16x32xf32>,
    return
  }
  func.func @transform_0(%arg0: i32) -> (i32, i32, i32) {
    %c0_i32 = arith.constant 0 : i32
    %c0_i32_0 = arith.constant 0 : i32
    %c0_i32_1 = arith.constant 0 : i32
    return %arg0, %c0_i32, %c0_i32_0 : i32, i32, i32
  }
  func.func @transform_1(%arg0: i32) -> (i32, i32) {
    %c0_i32 = arith.constant 0 : i32
    %c0_i32_0 = arith.constant 0 : i32
    %c0_i32_1 = arith.constant 0 : i32
    return %c0_i32, %c0_i32_0 : i32, i32
  }
  func.func @transform_2(%arg0: i32) -> (i32, i32) {
    %c0_i32 = arith.constant 0 : i32
    %c0_i32_0 = arith.constant 0 : i32
    %c0_i32_1 = arith.constant 0 : i32
    return %c0_i32, %c0_i32_0 : i32, i32
  }
  func.func @transform_3(%arg0: i32) -> (i32, i32) {
    %c0_i32 = arith.constant 0 : i32
    %c0_i32_0 = arith.constant 0 : i32
    %c0_i32_1 = arith.constant 0 : i32
    return %c0_i32, %c0_i32_0 : i32, i32
  }
  func.func @transform_4(%arg0: i32) -> (i32, i32) {
    %c0_i32 = arith.constant 0 : i32
    %c0_i32_0 = arith.constant 0 : i32
    %c0_i32_1 = arith.constant 0 : i32
    return %c0_i32, %c0_i32_0 : i32, i32
  }
  func.func @transform_5(%arg0: i32) -> (i32, i32, i32) {
    %c0_i32 = arith.constant 0 : i32
    %c0_i32_0 = arith.constant 0 : i32
    %c0_i32_1 = arith.constant 0 : i32
    return %arg0, %c0_i32, %c0_i32_0 : i32, i32, i32
  }
}

</mosaic_0001>

<llo_original>
// kernel: tpu_custom_call.1
$region0: #{tpu_custom_call.1}
  #allocation0 [shape = 'u32[]', space=smem, size = 0x4, offset = 0x4, fixed_abs, tag = 'smem constant byte address 0x4 - core index']
  #allocation1 [shape = 'u32[72,128]{1,0:T(1,128)}', space=vmem, size = 0x9000, scoped, tag = 'internal scratch']
  %s0 = inlined_call_operand.hbm [shape: f32[2,16,32], index: 0, kind: input, shape index: {}]
  %s1 = inlined_call_operand.hbm [shape: bf16[32,96], index: 1, kind: input, shape index: {}]
  %s2 = inlined_call_operand.vmem [shape: f32[1,96], index: 2, kind: input, shape index: {}]
  %s3 = inlined_call_operand.hbm [shape: bf16[32,32], index: 3, kind: input, shape index: {}]
  %s4 = inlined_call_operand.vmem [shape: f32[1,32], index: 4, kind: input, shape index: {}]
  %s5 = inlined_call_operand.hbm [shape: f32[2,16,32], index: 5, kind: output, shape index: {}]
  %s6 = sld [smem:[#allocation0]]
  $region65: #{tpu_custom_call.1} parent=0
    _
  %s8 = ssub.s32 1, %s6
  %s9 = scalar_select 0, %s8, %s6
  $region1: #{tpu_custom_call.1} parent=0
    #allocation2 [shape = 'u8[16384]{0}', space=vmem, size = 0x4000, scoped, tag = 'input window, operand 0']
    #allocation3 [shape = 's32[2]{0}', space=sflag, size = 0x8, scoped, tag = 'scoped memory for tpu_custom_call.1']
    #allocation4 [shape = 's32[2]{0}', space=sflag, size = 0x8, scoped, tag = 'scoped memory for tpu_custom_call.1']
    #allocation5 [shape = 'u8[8192]{0}', space=vmem, size = 0x2000, scoped, tag = 'input window, operand 1, single buffered']
    #allocation6 [shape = 's32[1]{0}', space=sflag, size = 0x4, scoped, tag = 'scoped memory for tpu_custom_call.1']
    #allocation7 [shape = 'u8[8192]{0}', space=vmem, size = 0x2000, scoped, tag = 'input window, operand 3, single buffered']
    #allocation8 [shape = 'u8[16384]{0}', space=vmem, size = 0x4000, scoped, tag = 'output window, operand 0']
    %10 = vsyncpa [#allocation3], 0
    %s11 = scalar_lea.sflag [#allocation3], 1
    %12 = vsyncpa %s11, 0
    %13 = vsyncpa [#allocation6], 0
    %14 = vsyncpa [#allocation4], 0
    %s15 = scalar_lea.sflag [#allocation4], 1
    %16 = vsyncpa %s15, 0
    loop: start=0, step=1, limit=4
    $region2: #{tpu_custom_call.1} parent=1 // loop_pre_header
      _
    $region3: #{tpu_custom_call.1} parent=1 // loop_header
      %s18 = sphi 0, %s22
      %p19 = scmp.ge.s32.totalorder %s18, 4
      %s28 = sphi 0, %s30
      %s31 = sphi 0, %s28
      %s32 = sphi 0, %s31
      %s48 = sphi 0, %s32
      %s52 = sphi 0, %s52
      %s54 = sphi 0, %s52
      %s55 = sphi 0, %s54
      %s69 = sphi 0, %s55
      %s73 = sphi 0, %s73
      %s75 = sphi 0, %s73
      %s76 = sphi 0, %s75
      %s90 = sphi 0, %s76
      %s94 = sphi 0, %s94
      %s96 = sphi 0, %s94
      %s97 = sphi 0, %s96
      %s111 = sphi 0, %s97
      %s115 = sphi 0, %s115
      %s117 = sphi 0, %s115
      %s118 = sphi 0, %s117
      %s132 = sphi 0, %s118
      %s138 = sphi 0, %s140
      %s141 = sphi 0, %s138
      %s142 = sphi 0, %s141
      %s158 = sphi 0, %s142
    $region4: #{tpu_custom_call.1} parent=1 // loop_header_branch
      %21 = sbr.rel (%p19) target = $region8
    $region5: #{tpu_custom_call.1} parent=1 // loop_body
      %s23 = ssub.s32 %s18, 1
      %s24 = ssub.s32 %s18, 2
      %s25 = sadd.s32 %s18, 1
      %s26 = ssub.s32 %s18, %s25
      %p27 = scmp.eq.s32.totalorder %s26, 0
      %s29 = sadd.s32 %s28, 1
      %s30 = scalar_select %p27, %s28, %s29
      %p33 = pneg %p27
      %p34 = scmp.eq.s32.totalorder %s18, 1
      %p35 = por %p33, %p34
      %p36 = scmp.ne.s32.totalorder %s28, %s31
      %p37 = scmp.eq.s32.totalorder %s18, 0
      %p38 = por %p36, %p37
      %p39 = scmp.ne.s32.totalorder %s28, %s31
      %p40 = scmp.eq.s32.totalorder %s23, 1
      %p41 = por %p39, %p40
      %p42 = scmp.ne.s32.totalorder %s31, %s32
      %p43 = scmp.eq.s32.totalorder %s23, 0
      %p44 = por %p42, %p43
      %p45 = scmp.ne.s32.totalorder %s31, %s32
      %p46 = scmp.eq.s32.totalorder %s24, 1
      %p47 = por %p45, %p46
      %p49 = scmp.ne.s32.totalorder %s32, %s48
      %p50 = scmp.eq.s32.totalorder %s24, 0
      %p51 = por %p49, %p50
      %s53 = sadd.s32 %s52, 1
      %p56 = scmp.eq.s32.totalorder %s18, 1
      %p57 = scmp.ne.s32.totalorder %s52, %s54
      %p58 = scmp.eq.s32.totalorder %s18, 0
      %p59 = por %p57, %p58
      %p60 = scmp.ne.s32.totalorder %s52, %s54
      %p61 = scmp.eq.s32.totalorder %s23, 1
      %p62 = por %p60, %p61
      %p63 = scmp.ne.s32.totalorder %s54, %s55
      %p64 = scmp.eq.s32.totalorder %s23, 0
      %p65 = por %p63, %p64
      %p66 = scmp.ne.s32.totalorder %s54, %s55
      %p67 = scmp.eq.s32.totalorder %s24, 1
      %p68 = por %p66, %p67
      %p70 = scmp.ne.s32.totalorder %s55, %s69
      %p71 = scmp.eq.s32.totalorder %s24, 0
      %p72 = por %p70, %p71
      %s74 = sadd.s32 %s73, 1
      %p77 = scmp.eq.s32.totalorder %s18, 1
      %p78 = scmp.ne.s32.totalorder %s73, %s75
      %p79 = scmp.eq.s32.totalorder %s18, 0
      %p80 = por %p78, %p79
      %p81 = scmp.ne.s32.totalorder %s73, %s75
      %p82 = scmp.eq.s32.totalorder %s23, 1
      %p83 = por %p81, %p82
      %p84 = scmp.ne.s32.totalorder %s75, %s76
      %p85 = scmp.eq.s32.totalorder %s23, 0
      %p86 = por %p84, %p85
      %p87 = scmp.ne.s32.totalorder %s75, %s76
      %p88 = scmp.eq.s32.totalorder %s24, 1
      %p89 = por %p87, %p88
      %p91 = scmp.ne.s32.totalorder %s76, %s90
      %p92 = scmp.eq.s32.totalorder %s24, 0
      %p93 = por %p91, %p92
      %s95 = sadd.s32 %s94, 1
      %p98 = scmp.eq.s32.totalorder %s18, 1
      %p99 = scmp.ne.s32.totalorder %s94, %s96
      %p100 = scmp.eq.s32.totalorder %s18, 0
      %p101 = por %p99, %p100
      %p102 = scmp.ne.s32.totalorder %s94, %s96
      %p103 = scmp.eq.s32.totalorder %s23, 1
      %p104 = por %p102, %p103
      %p105 = scmp.ne.s32.totalorder %s96, %s97
      %p106 = scmp.eq.s32.totalorder %s23, 0
      %p107 = por %p105, %p106
      %p108 = scmp.ne.s32.totalorder %s96, %s97
      %p109 = scmp.eq.s32.totalorder %s24, 1
      %p110 = por %p108, %p109
      %p112 = scmp.ne.s32.totalorder %s97, %s111
      %p113 = scmp.eq.s32.totalorder %s24, 0
      %p114 = por %p112, %p113
      %s116 = sadd.s32 %s115, 1
      %p119 = scmp.eq.s32.totalorder %s18, 1
      %p120 = scmp.ne.s32.totalorder %s115, %s117
      %p121 = scmp.eq.s32.totalorder %s18, 0
      %p122 = por %p120, %p121
      %p123 = scmp.ne.s32.totalorder %s115, %s117
      %p124 = scmp.eq.s32.totalorder %s23, 1
      %p125 = por %p123, %p124
      %p126 = scmp.ne.s32.totalorder %s117, %s118
      %p127 = scmp.eq.s32.totalorder %s23, 0
      %p128 = por %p126, %p127
      %p129 = scmp.ne.s32.totalorder %s117, %s118
      %p130 = scmp.eq.s32.totalorder %s24, 1
      %p131 = por %p129, %p130
      %p133 = scmp.ne.s32.totalorder %s118, %s132
      %p134 = scmp.eq.s32.totalorder %s24, 0
      %p135 = por %p133, %p134
      %s136 = ssub.s32 %s18, %s25
      %p137 = scmp.eq.s32.totalorder %s136, 0
      %s139 = sadd.s32 %s138, 1
      %s140 = scalar_select %p137, %s138, %s139
      %p143 = pneg %p137
      %p144 = scmp.eq.s32.totalorder %s18, 1
      %p145 = por %p143, %p144
      %p146 = scmp.ne.s32.totalorder %s138, %s141
      %p147 = scmp.eq.s32.totalorder %s18, 0
      %p148 = por %p146, %p147
      %p149 = scmp.ne.s32.totalorder %s138, %s141
      %p150 = scmp.eq.s32.totalorder %s23, 1
      %p151 = por %p149, %p150
      %p152 = scmp.ne.s32.totalorder %s141, %s142
      %p153 = scmp.eq.s32.totalorder %s23, 0
      %p154 = por %p152, %p153
      %p155 = scmp.ne.s32.totalorder %s141, %s142
      %p156 = scmp.eq.s32.totalorder %s24, 1
      %p157 = por %p155, %p156
      %p159 = scmp.ne.s32.totalorder %s142, %s158
      %p160 = scmp.eq.s32.totalorder %s24, 0
      %p161 = por %p159, %p160
      %p162 = scmp.le.s32.totalorder 1, %s18
      %p163 = scmp.lt.s32.totalorder %s18, 3
      %p164 = pnand %p162, %p163
      %p165 = pneg %p164
      // Predicated region
      $region9: #{tpu_custom_call.1} parent=5 // pred_check
        _
      $region10: #{tpu_custom_call.1} parent=5 // pred_check_branch
        %167 = sbr.rel (%p164) target = $region12
      $region11: #{tpu_custom_call.1} parent=5 // pred_region
        %s168 = ssub.s32 %s18, 1
        // Predicated region
        $region13: #{tpu_custom_call.1} parent=11 // pred_check
          %p169 = pneg %p65
        $region14: #{tpu_custom_call.1} parent=11 // pred_check_branch
          %171 = sbr.rel (%p169) target = $region16
        $region15: #{tpu_custom_call.1} parent=11 // pred_region
          %173 = vsyncadd [#allocation6], 0
          %s174 = sshll.u32 %s1, 4
          %s175 = int_to_ptr.hbm [resolvable:$true] %s174
          %s176 = sshll.u32 [#allocation5], 4
          %s177 = int_to_ptr.vmem [resolvable:$true] %s176
          %182 = dma.hbm_to_vmem [thread:$0]  %s175, 256, %s177, [#allocation6], 64, 64, 4
        $region16: #{tpu_custom_call.1} parent=11 // pred_fallthru
          _
        // Predicated region
        $region17: #{tpu_custom_call.1} parent=11 // pred_check
          %p183 = pneg %p86
        $region18: #{tpu_custom_call.1} parent=11 // pred_check_branch
          %185 = sbr.rel (%p183) target = $region20
        $region19: #{tpu_custom_call.1} parent=11 // pred_region
          _
        $region20: #{tpu_custom_call.1} parent=11 // pred_fallthru
          _
        // Predicated region
        $region21: #{tpu_custom_call.1} parent=11 // pred_check
          %p186 = pneg %p107
        $region22: #{tpu_custom_call.1} parent=11 // pred_check_branch
          %188 = sbr.rel (%p186) target = $region24
        $region23: #{tpu_custom_call.1} parent=11 // pred_region
          %190 = vsyncadd [#allocation6], 0
          %s191 = sshll.u32 %s3, 4
          %s192 = int_to_ptr.hbm [resolvable:$true] %s191
          %s193 = sshll.u32 [#allocation7], 4
          %s194 = int_to_ptr.vmem [resolvable:$true] %s193
          %199 = dma.hbm_to_vmem [thread:$0]  %s192, 256, %s194, [#allocation6], 64, 64, 4
        $region24: #{tpu_custom_call.1} parent=11 // pred_fallthru
          _
        // Predicated region
        $region25: #{tpu_custom_call.1} parent=11 // pred_check
          %p200 = pneg %p128
        $region26: #{tpu_custom_call.1} parent=11 // pred_check_branch
          %202 = sbr.rel (%p200) target = $region28
        $region27: #{tpu_custom_call.1} parent=11 // pred_region
          _
        $region28: #{tpu_custom_call.1} parent=11 // pred_fallthru
          _
      $region12: #{tpu_custom_call.1} parent=5 // pred_fallthru
        _
      %p203 = scmp.lt.s32.totalorder %s18, 2
      // Predicated region
      $region29: #{tpu_custom_call.1} parent=5 // pred_check
        %p204 = pneg %p203
      $region30: #{tpu_custom_call.1} parent=5 // pred_check_branch
        %206 = sbr.rel (%p204) target = $region32
      $region31: #{tpu_custom_call.1} parent=5 // pred_region
        // Predicated region
        $region33: #{tpu_custom_call.1} parent=31 // pred_check
          %p207 = pneg %p38
        $region34: #{tpu_custom_call.1} parent=31 // pred_check_branch
          %209 = sbr.rel (%p207) target = $region36
        $region35: #{tpu_custom_call.1} parent=31 // pred_region
          %s210 = sand.u32 %s28, 1
          %s211 = scalar_lea.sflag [#allocation3], %s210
          %s212 = sand.u32 %s28, 1
          %s213 = smul.addr %s212, 16
          %s214 = scalar_lea.vmem [#allocation2], %s213
          %216 = vsyncadd %s211, 0
          %s217 = smul.addr %s18, 2
          %s218 = smul.addr %s217, 8
          %s219 = scalar_lea.hbm %s0, %s218
          %s220 = sshll.u32 %s219, 4
          %s221 = int_to_ptr.hbm [resolvable:$true] %s220
          %s222 = sshll.u32 %s214, 4
          %s223 = int_to_ptr.vmem [resolvable:$true] %s222
          %228 = dma.hbm_to_vmem [thread:$0]  %s221, 256, %s223, %s211, 128, 128, 8
        $region36: #{tpu_custom_call.1} parent=31 // pred_fallthru
          _
      $region32: #{tpu_custom_call.1} parent=5 // pred_fallthru
        _
      %p229 = scmp.le.s32.totalorder 1, %s18
      %p230 = scmp.lt.s32.totalorder %s18, 3
      %p231 = pnand %p229, %p230
      %p232 = pneg %p231
      // Predicated region
      $region37: #{tpu_custom_call.1} parent=5 // pred_check
        _
      $region38: #{tpu_custom_call.1} parent=5 // pred_check_branch
        %234 = sbr.rel (%p231) target = $region40
      $region39: #{tpu_custom_call.1} parent=5 // pred_region
        %s235 = ssub.s32 %s18, 1
        %s236 = sand.u32 %s31, 1
        %s237 = scalar_lea.sflag [#allocation3], %s236
        %s238 = sand.u32 %s31, 1
        %s239 = smul.addr %s238, 16
        %s240 = scalar_lea.vmem [#allocation2], %s239
        // Predicated region
        $region41: #{tpu_custom_call.1} parent=39 // pred_check
          %p241 = pneg %p44
        $region42: #{tpu_custom_call.1} parent=39 // pred_check_branch
          %243 = sbr.rel (%p241) target = $region44
        $region43: #{tpu_custom_call.1} parent=39 // pred_region
          %245 = dma.done %s237, 256
        $region44: #{tpu_custom_call.1} parent=39 // pred_fallthru
          _
        // Predicated region
        $region45: #{tpu_custom_call.1} parent=39 // pred_check
          %p246 = pneg %p65
        $region46: #{tpu_custom_call.1} parent=39 // pred_check_branch
          %248 = sbr.rel (%p246) target = $region48
        $region47: #{tpu_custom_call.1} parent=39 // pred_region
          %250 = dma.done [#allocation6], 256
        $region48: #{tpu_custom_call.1} parent=39 // pred_fallthru
          _
        // Predicated region
        $region49: #{tpu_custom_call.1} parent=39 // pred_check
          %p251 = pneg %p107
        $region50: #{tpu_custom_call.1} parent=39 // pred_check_branch
          %253 = sbr.rel (%p251) target = $region52
        $region51: #{tpu_custom_call.1} parent=39 // pred_region
          %255 = dma.done [#allocation6], 256
        $region52: #{tpu_custom_call.1} parent=39 // pred_fallthru
          _
        %s256 = sand.u32 %s31, 1
        %s257 = scalar_lea.sflag [#allocation3], %s256
        %s258 = sand.u32 %s31, 1
        %s259 = smul.addr %s258, 16
        %s260 = scalar_lea.vmem [#allocation2], %s259
        %p261 = pneg %p44
        %p262 = pneg %p41
        %p263 = pneg %p65
        %p264 = pneg %p62
        %p265 = pneg %p86
        %p266 = pneg %p83
        %p267 = pneg %p107
        %p268 = pneg %p104
        %p269 = pneg %p128
        %p270 = pneg %p125
        %p271 = pneg %p154
        %p272 = pneg %p151
        %s273 = sand.u32 %s141, 1
        %s274 = scalar_lea.sflag [#allocation4], %s273
        %s275 = sand.u32 %s141, 1
        %s276 = smul.addr %s275, 16
        %s277 = scalar_lea.vmem [#allocation8], %s276
        %v279 = vld [vmem:[%s240] sm:$0xff]
        %v280 = vld [vmem:[%s240 + $0x8] sm:$0xff]
        %v281 = vpack.c.bf16 %v280, %v279
        %v282 = vld [vmem:[#allocation5] sm:$0xf]
        %v283 = vld [vmem:[#allocation5 + $0x4] sm:$0xf]
        %v284 = vld [vmem:[#allocation5 + $0x8] sm:$0xf]
        %v285 = vld [vmem:[#allocation5 + $0xc] sm:$0xf]
        %v286 = vld [vmem:[%s2] sm:$0x1]
        %v288 = vperm.slane %v286, 0
        %v294 = vunpack.c.l.b16 %v282
        %v295 = vunpack.c.l.b16 %v283
        %v296 = vunpack.c.l.b16 %v284
        %v297 = vunpack.c.l.b16 %v285
        %v298 = vpack.c.b16 %v295, %v294
        %v299 = vpack.c.b16 %v297, %v296
        %vm302 = vcmask 261120
        %v304 = vsel %vm302, %v281, 0
        %306 = vmatpush.bf16.msra.mxu0 0
        %307 = vmatpush.bf16.msra.mxu0 0
        %308 = vmatpush.bf16.msra.mxu0 0
        %309 = vmatpush.bf16.msra.mxu0 0
        %310 = vmatpush.bf16.msra.mxu0 0
        %311 = vmatpush.bf16.msra.mxu0 0
        %312 = vmatpush.bf16.msra.mxu0 %v299
        %313 = vmatpush.bf16.msra.mxu0 %v298
        %314 = vmatmul.bf16.gmra.mxu0 %v304
        %v315 = vpop.f32.mrf.mxu0
        %v316 = vadd.f32 %v288, %v315
        %v317 = vpop.f32.mrf.mxu0
        %v318 = vadd.f32 %v288, %v317
        %319 = vdwg.mxu0
        %v320 = vpack.c.bf16 %v316, %v316
        %v321 = vpack.c.bf16 %v318, %v318
        %v324 = vunpack.c.l.b16 %v320
        %v325 = vunpack.c.l.b16 %v321
        %v326 = vpack.c.b16 %v325, %v324
        %327 = vrot.lane.b32.xlu0 %v326, 96
        %v328 = vpop.permute.xlu0 %327
        %vm329 = vcmask 31744
        %v331 = vsel %vm329, %v326, 0
        %v334 = vsel %vm329, %v328, 0
        %336 = vmatpush.bf16.xpose.msra.mxu0 0
        %337 = vmatpush.bf16.xpose.msra.mxu0 0
        %338 = vmatpush.bf16.xpose.msra.mxu0 0
        %339 = vmatpush.bf16.xpose.msra.mxu0 0
        %340 = vmatpush.bf16.xpose.msra.mxu0 0
        %341 = vmatpush.bf16.xpose.msra.mxu0 0
        %342 = vmatpush.bf16.xpose.msra.mxu0 0
        %343 = vmatpush.bf16.xpose.msra.mxu0 %v334
        %344 = vmatmul.bf16.gmra.mxu0 %v331
        %v345 = vpop.f32.mrf.mxu0
        %v346 = vadd.f32 0.0, %v345
        %v347 = vpop.f32.mrf.mxu0
        %v348 = vadd.f32 0.0, %v347
        %349 = vdwg.mxu0
        %vm350 = vcmask 130048
        %v351 = vsel %vm350, %v346, -inf
        %352 = vmax.xlane.f32.xlu0 %v351
        %v353 = vpop.xlane.xlu0 %352
        %v354 = vsel %vm350, %v348, -inf
        %355 = vmax.xlane.f32.xlu0 %v354
        %v356 = vpop.xlane.xlu0 %355
        %v357 = vsub.f32 %v346, %v353
        %v358 = vsub.f32 %v348, %v356
        %v359 = vmul.f32 %v357, 1.442695
        %v360 = vpow.pop %v359
        %v361 = vmul.f32 %v358, 1.442695
        %v362 = vpow.pop %v361
        %v363 = vsel %vm350, %v360, 0.0
        %364 = vadd.xlane.f32.xlu0 %v363
        %v365 = vpop.xlane.xlu0 %364
        %v366 = vsel %vm350, %v362, 0.0
        %367 = vadd.xlane.f32.xlu0 %v366
        %v368 = vpop.xlane.xlu0 %367
        %v369 = vpack.c.bf16 %v362, %v360
        %370 = vrot.lane.b32.xlu0 %v326, 64
        %v371 = vpop.permute.xlu0 %370
        %v374 = vsel %vm350, %v369, 0
        %376 = vmatpush.bf16.msra.mxu0 0
        %377 = vmatpush.bf16.msra.mxu0 0
        %378 = vmatpush.bf16.msra.mxu0 0
        %379 = vmatpush.bf16.msra.mxu0 0
        %380 = vmatpush.bf16.msra.mxu0 0
        %381 = vmatpush.bf16.msra.mxu0 0
        %382 = vmatpush.bf16.msra.mxu0 0
        %383 = vmatpush.bf16.msra.mxu0 %v371
        %384 = vmatmul.bf16.gmra.mxu0 %v374
        %v385 = vpop.f32.mrf.mxu0
        %v386 = vadd.f32 0.0, %v385
        %v387 = vpop.f32.mrf.mxu0
        %v388 = vadd.f32 0.0, %v387
        %389 = vdwg.mxu0
        %v390 = vrcp.pop %v365
        %v391 = vrcp.pop %v368
        %v392 = vmul.f32 %v386, %v390
        %v393 = vmul.f32 %v388, %v391
        %v394 = vpack.c.bf16 %v392, %v392
        %v395 = vpack.c.bf16 %v393, %v393
        %396 = vrot.lane.b32.xlu0 %v326, 124
        %v397 = vpop.permute.xlu0 %396
        %398 = vrot.lane.b32.xlu0 %v326, 92
        %v399 = vpop.permute.xlu0 %398
        %v401 = vsel %vm329, %v397, 0
        %v404 = vsel %vm329, %v399, 0
        %406 = vmatpush.bf16.xpose.msra.mxu0 0
        %407 = vmatpush.bf16.xpose.msra.mxu0 0
        %408 = vmatpush.bf16.xpose.msra.mxu0 0
        %409 = vmatpush.bf16.xpose.msra.mxu0 0
        %410 = vmatpush.bf16.xpose.msra.mxu0 0
        %411 = vmatpush.bf16.xpose.msra.mxu0 0
        %412 = vmatpush.bf16.xpose.msra.mxu0 0
        %413 = vmatpush.bf16.xpose.msra.mxu0 %v404
        %414 = vmatmul.bf16.gmra.mxu0 %v401
        %v415 = vpop.f32.mrf.mxu0
        %v416 = vadd.f32 0.0, %v415
        %v417 = vpop.f32.mrf.mxu0
        %v418 = vadd.f32 0.0, %v417
        %419 = vdwg.mxu0
        %v420 = vsel %vm350, %v416, -inf
        %421 = vmax.xlane.f32.xlu0 %v420
        %v422 = vpop.xlane.xlu0 %421
        %v423 = vsel %vm350, %v418, -inf
        %424 = vmax.xlane.f32.xlu0 %v423
        %v425 = vpop.xlane.xlu0 %424
        %v426 = vsub.f32 %v416, %v422
        %v427 = vsub.f32 %v418, %v425
        %v428 = vmul.f32 %v426, 1.442695
        %v429 = vpow.pop %v428
        %v430 = vmul.f32 %v427, 1.442695
        %v431 = vpow.pop %v430
        %v432 = vsel %vm350, %v429, 0.0
        %433 = vadd.xlane.f32.xlu0 %v432
        %v434 = vpop.xlane.xlu0 %433
        %v435 = vsel %vm350, %v431, 0.0
        %436 = vadd.xlane.f32.xlu0 %v435
        %v437 = vpop.xlane.xlu0 %436
        %v438 = vpack.c.bf16 %v431, %v429
        %439 = vrot.lane.b32.xlu0 %v326, 60
        %v440 = vpop.permute.xlu0 %439
        %v443 = vsel %vm350, %v438, 0
        %445 = vmatpush.bf16.msra.mxu0 0
        %446 = vmatpush.bf16.msra.mxu0 0
        %447 = vmatpush.bf16.msra.mxu0 0
        %448 = vmatpush.bf16.msra.mxu0 0
        %449 = vmatpush.bf16.msra.mxu0 0
        %450 = vmatpush.bf16.msra.mxu0 0
        %451 = vmatpush.bf16.msra.mxu0 0
        %452 = vmatpush.bf16.msra.mxu0 %v440
        %453 = vmatmul.bf16.gmra.mxu0 %v443
        %v454 = vpop.f32.mrf.mxu0
        %v455 = vadd.f32 0.0, %v454
        %v456 = vpop.f32.mrf.mxu0
        %v457 = vadd.f32 0.0, %v456
        %458 = vdwg.mxu0
        %v459 = vrcp.pop %v434
        %v460 = vrcp.pop %v437
        %v461 = vmul.f32 %v455, %v459
        %v462 = vmul.f32 %v457, %v460
        %v463 = vpack.c.bf16 %v461, %v461
        %v464 = vpack.c.bf16 %v462, %v462
        %465 = vrot.lane.b32.xlu0 %v326, 120
        %v466 = vpop.permute.xlu0 %465
        %467 = vrot.lane.b32.xlu0 %v326, 88
        %v468 = vpop.permute.xlu0 %467
        %v470 = vsel %vm329, %v466, 0
        %v473 = vsel %vm329, %v468, 0
        %475 = vmatpush.bf16.xpose.msra.mxu0 0
        %476 = vmatpush.bf16.xpose.msra.mxu0 0
        %477 = vmatpush.bf16.xpose.msra.mxu0 0
        %478 = vmatpush.bf16.xpose.msra.mxu0 0
        %479 = vmatpush.bf16.xpose.msra.mxu0 0
        %480 = vmatpush.bf16.xpose.msra.mxu0 0
        %481 = vmatpush.bf16.xpose.msra.mxu0 0
        %482 = vmatpush.bf16.xpose.msra.mxu0 %v473
        %483 = vmatmul.bf16.gmra.mxu0 %v470
        %v484 = vpop.f32.mrf.mxu0
        %v485 = vadd.f32 0.0, %v484
        %v486 = vpop.f32.mrf.mxu0
        %v487 = vadd.f32 0.0, %v486
        %488 = vdwg.mxu0
        %v489 = vsel %vm350, %v485, -inf
        %490 = vmax.xlane.f32.xlu0 %v489
        %v491 = vpop.xlane.xlu0 %490
        %v492 = vsel %vm350, %v487, -inf
        %493 = vmax.xlane.f32.xlu0 %v492
        %v494 = vpop.xlane.xlu0 %493
        %v495 = vsub.f32 %v485, %v491
        %v496 = vsub.f32 %v487, %v494
        %v497 = vmul.f32 %v495, 1.442695
        %v498 = vpow.pop %v497
        %v499 = vmul.f32 %v496, 1.442695
        %v500 = vpow.pop %v499
        %v501 = vsel %vm350, %v498, 0.0
        %502 = vadd.xlane.f32.xlu0 %v501
        %v503 = vpop.xlane.xlu0 %502
        %v504 = vsel %vm350, %v500, 0.0
        %505 = vadd.xlane.f32.xlu0 %v504
        %v506 = vpop.xlane.xlu0 %505
        %v507 = vpack.c.bf16 %v500, %v498
        %508 = vrot.lane.b32.xlu0 %v326, 56
        %v509 = vpop.permute.xlu0 %508
        %v512 = vsel %vm350, %v507, 0
        %514 = vmatpush.bf16.msra.mxu0 0
        %515 = vmatpush.bf16.msra.mxu0 0
        %516 = vmatpush.bf16.msra.mxu0 0
        %517 = vmatpush.bf16.msra.mxu0 0
        %518 = vmatpush.bf16.msra.mxu0 0
        %519 = vmatpush.bf16.msra.mxu0 0
        %520 = vmatpush.bf16.msra.mxu0 0
        %521 = vmatpush.bf16.msra.mxu0 %v509
        %522 = vmatmul.bf16.gmra.mxu0 %v512
        %v523 = vpop.f32.mrf.mxu0
        %v524 = vadd.f32 0.0, %v523
        %v525 = vpop.f32.mrf.mxu0
        %v526 = vadd.f32 0.0, %v525
        %527 = vdwg.mxu0
        %v528 = vrcp.pop %v503
        %v529 = vrcp.pop %v506
        %v530 = vmul.f32 %v524, %v528
        %v531 = vmul.f32 %v526, %v529
        %v532 = vpack.c.bf16 %v530, %v530
        %v533 = vpack.c.bf16 %v531, %v531
        %534 = vrot.lane.b32.xlu0 %v326, 116
        %v535 = vpop.permute.xlu0 %534
        %536 = vrot.lane.b32.xlu0 %v326, 84
        %v537 = vpop.permute.xlu0 %536
        %v539 = vsel %vm329, %v535, 0
        %v542 = vsel %vm329, %v537, 0
        %544 = vmatpush.bf16.xpose.msra.mxu0 0
        %545 = vmatpush.bf16.xpose.msra.mxu0 0
        %546 = vmatpush.bf16.xpose.msra.mxu0 0
        %547 = vmatpush.bf16.xpose.msra.mxu0 0
        %548 = vmatpush.bf16.xpose.msra.mxu0 0
        %549 = vmatpush.bf16.xpose.msra.mxu0 0
        %550 = vmatpush.bf16.xpose.msra.mxu0 0
        %551 = vmatpush.bf16.xpose.msra.mxu0 %v542
        %552 = vmatmul.bf16.gmra.mxu0 %v539
        %v553 = vpop.f32.mrf.mxu0
        %v554 = vadd.f32 0.0, %v553
        %v555 = vpop.f32.mrf.mxu0
        %v556 = vadd.f32 0.0, %v555
        %557 = vdwg.mxu0
        %v558 = vsel %vm350, %v554, -inf
        %559 = vmax.xlane.f32.xlu0 %v558
        %v560 = vpop.xlane.xlu0 %559
        %v561 = vsel %vm350, %v556, -inf
        %562 = vmax.xlane.f32.xlu0 %v561
        %v563 = vpop.xlane.xlu0 %562
        %v564 = vsub.f32 %v554, %v560
        %v565 = vsub.f32 %v556, %v563
        %v566 = vmul.f32 %v564, 1.442695
        %v567 = vpow.pop %v566
        %v568 = vmul.f32 %v565, 1.442695
        %v569 = vpow.pop %v568
        %v570 = vsel %vm350, %v567, 0.0
        %571 = vadd.xlane.f32.xlu0 %v570
        %v572 = vpop.xlane.xlu0 %571
        %v573 = vsel %vm350, %v569, 0.0
        %574 = vadd.xlane.f32.xlu0 %v573
        %v575 = vpop.xlane.xlu0 %574
        %v576 = vpack.c.bf16 %v569, %v567
        %577 = vrot.lane.b32.xlu0 %v326, 52
        %v578 = vpop.permute.xlu0 %577
        %v581 = vsel %vm350, %v576, 0
        %583 = vmatpush.bf16.msra.mxu0 0
        %584 = vmatpush.bf16.msra.mxu0 0
        %585 = vmatpush.bf16.msra.mxu0 0
        %586 = vmatpush.bf16.msra.mxu0 0
        %587 = vmatpush.bf16.msra.mxu0 0
        %588 = vmatpush.bf16.msra.mxu0 0
        %589 = vmatpush.bf16.msra.mxu0 0
        %590 = vmatpush.bf16.msra.mxu0 %v578
        %591 = vmatmul.bf16.gmra.mxu0 %v581
        %v592 = vpop.f32.mrf.mxu0
        %v593 = vadd.f32 0.0, %v592
        %v594 = vpop.f32.mrf.mxu0
        %v595 = vadd.f32 0.0, %v594
        %596 = vdwg.mxu0
        %v597 = vrcp.pop %v572
        %v598 = vrcp.pop %v575
        %v599 = vmul.f32 %v593, %v597
        %v600 = vmul.f32 %v595, %v598
        %v601 = vpack.c.bf16 %v599, %v599
        %v602 = vpack.c.bf16 %v600, %v600
        %603 = vrot.lane.b32.xlu0 %v326, 112
        %v604 = vpop.permute.xlu0 %603
        %605 = vrot.lane.b32.xlu0 %v326, 80
        %v606 = vpop.permute.xlu0 %605
        %v608 = vsel %vm329, %v604, 0
        %v611 = vsel %vm329, %v606, 0
        %613 = vmatpush.bf16.xpose.msra.mxu0 0
        %614 = vmatpush.bf16.xpose.msra.mxu0 0
        %615 = vmatpush.bf16.xpose.msra.mxu0 0
        %616 = vmatpush.bf16.xpose.msra.mxu0 0
        %617 = vmatpush.bf16.xpose.msra.mxu0 0
        %618 = vmatpush.bf16.xpose.msra.mxu0 0
        %619 = vmatpush.bf16.xpose.msra.mxu0 0
        %620 = vmatpush.bf16.xpose.msra.mxu0 %v611
        %621 = vmatmul.bf16.gmra.mxu0 %v608
        %v622 = vpop.f32.mrf.mxu0
        %v623 = vadd.f32 0.0, %v622
        %v624 = vpop.f32.mrf.mxu0
        %v625 = vadd.f32 0.0, %v624
        %626 = vdwg.mxu0
        %v627 = vsel %vm350, %v623, -inf
        %628 = vmax.xlane.f32.xlu0 %v627
        %v629 = vpop.xlane.xlu0 %628
        %v630 = vsel %vm350, %v625, -inf
        %631 = vmax.xlane.f32.xlu0 %v630
        %v632 = vpop.xlane.xlu0 %631
        %v633 = vsub.f32 %v623, %v629
        %v634 = vsub.f32 %v625, %v632
        %v635 = vmul.f32 %v633, 1.442695
        %v636 = vpow.pop %v635
        %v637 = vmul.f32 %v634, 1.442695
        %v638 = vpow.pop %v637
        %v639 = vsel %vm350, %v636, 0.0
        %640 = vadd.xlane.f32.xlu0 %v639
        %v641 = vpop.xlane.xlu0 %640
        %v642 = vsel %vm350, %v638, 0.0
        %643 = vadd.xlane.f32.xlu0 %v642
        %v644 = vpop.xlane.xlu0 %643
        %v645 = vpack.c.bf16 %v638, %v636
        %646 = vrot.lane.b32.xlu0 %v326, 48
        %v647 = vpop.permute.xlu0 %646
        %v650 = vsel %vm350, %v645, 0
        %652 = vmatpush.bf16.msra.mxu0 0
        %653 = vmatpush.bf16.msra.mxu0 0
        %654 = vmatpush.bf16.msra.mxu0 0
        %655 = vmatpush.bf16.msra.mxu0 0
        %656 = vmatpush.bf16.msra.mxu0 0
        %657 = vmatpush.bf16.msra.mxu0 0
        %658 = vmatpush.bf16.msra.mxu0 0
        %659 = vmatpush.bf16.msra.mxu0 %v647
        %660 = vmatmul.bf16.gmra.mxu0 %v650
        %v661 = vpop.f32.mrf.mxu0
        %v662 = vadd.f32 0.0, %v661
        %v663 = vpop.f32.mrf.mxu0
        %v664 = vadd.f32 0.0, %v663
        %665 = vdwg.mxu0
        %v666 = vrcp.pop %v641
        %v667 = vrcp.pop %v644
        %v668 = vmul.f32 %v662, %v666
        %v669 = vmul.f32 %v664, %v667
        %v670 = vpack.c.bf16 %v668, %v668
        %v671 = vpack.c.bf16 %v669, %v669
        %672 = vrot.lane.b32.xlu0 %v326, 108
        %v673 = vpop.permute.xlu0 %672
        %674 = vrot.lane.b32.xlu0 %v326, 76
        %v675 = vpop.permute.xlu0 %674
        %v677 = vsel %vm329, %v673, 0
        %v680 = vsel %vm329, %v675, 0
        %682 = vmatpush.bf16.xpose.msra.mxu0 0
        %683 = vmatpush.bf16.xpose.msra.mxu0 0
        %684 = vmatpush.bf16.xpose.msra.mxu0 0
        %685 = vmatpush.bf16.xpose.msra.mxu0 0
        %686 = vmatpush.bf16.xpose.msra.mxu0 0
        %687 = vmatpush.bf16.xpose.msra.mxu0 0
        %688 = vmatpush.bf16.xpose.msra.mxu0 0
        %689 = vmatpush.bf16.xpose.msra.mxu0 %v680
        %690 = vmatmul.bf16.gmra.mxu0 %v677
        %v691 = vpop.f32.mrf.mxu0
        %v692 = vadd.f32 0.0, %v691
        %v693 = vpop.f32.mrf.mxu0
        %v694 = vadd.f32 0.0, %v693
        %695 = vdwg.mxu0
        %v696 = vsel %vm350, %v692, -inf
        %697 = vmax.xlane.f32.xlu0 %v696
        %v698 = vpop.xlane.xlu0 %697
        %v699 = vsel %vm350, %v694, -inf
        %700 = vmax.xlane.f32.xlu0 %v699
        %v701 = vpop.xlane.xlu0 %700
        %v702 = vsub.f32 %v692, %v698
        %v703 = vsub.f32 %v694, %v701
        %v704 = vmul.f32 %v702, 1.442695
        %v705 = vpow.pop %v704
        %v706 = vmul.f32 %v703, 1.442695
        %v707 = vpow.pop %v706
        %v708 = vsel %vm350, %v705, 0.0
        %709 = vadd.xlane.f32.xlu0 %v708
        %v710 = vpop.xlane.xlu0 %709
        %v711 = vsel %vm350, %v707, 0.0
        %712 = vadd.xlane.f32.xlu0 %v711
        %v713 = vpop.xlane.xlu0 %712
        %v714 = vpack.c.bf16 %v707, %v705
        %715 = vrot.lane.b32.xlu0 %v326, 44
        %v716 = vpop.permute.xlu0 %715
        %v719 = vsel %vm350, %v714, 0
        %721 = vmatpush.bf16.msra.mxu0 0
        %722 = vmatpush.bf16.msra.mxu0 0
        %723 = vmatpush.bf16.msra.mxu0 0
        %724 = vmatpush.bf16.msra.mxu0 0
        %725 = vmatpush.bf16.msra.mxu0 0
        %726 = vmatpush.bf16.msra.mxu0 0
        %727 = vmatpush.bf16.msra.mxu0 0
        %728 = vmatpush.bf16.msra.mxu0 %v716
        %729 = vmatmul.bf16.gmra.mxu0 %v719
        %v730 = vpop.f32.mrf.mxu0
        %v731 = vadd.f32 0.0, %v730
        %v732 = vpop.f32.mrf.mxu0
        %v733 = vadd.f32 0.0, %v732
        %734 = vdwg.mxu0
        %v735 = vrcp.pop %v710
        %v736 = vrcp.pop %v713
        %v737 = vmul.f32 %v731, %v735
        %v738 = vmul.f32 %v733, %v736
        %v739 = vpack.c.bf16 %v737, %v737
        %v740 = vpack.c.bf16 %v738, %v738
        %741 = vrot.lane.b32.xlu0 %v326, 104
        %v742 = vpop.permute.xlu0 %741
        %743 = vrot.lane.b32.xlu0 %v326, 72
        %v744 = vpop.permute.xlu0 %743
        %v746 = vsel %vm329, %v742, 0
        %v749 = vsel %vm329, %v744, 0
        %751 = vmatpush.bf16.xpose.msra.mxu0 0
        %752 = vmatpush.bf16.xpose.msra.mxu0 0
        %753 = vmatpush.bf16.xpose.msra.mxu0 0
        %754 = vmatpush.bf16.xpose.msra.mxu0 0
        %755 = vmatpush.bf16.xpose.msra.mxu0 0
        %756 = vmatpush.bf16.xpose.msra.mxu0 0
        %757 = vmatpush.bf16.xpose.msra.mxu0 0
        %758 = vmatpush.bf16.xpose.msra.mxu0 %v749
        %759 = vmatmul.bf16.gmra.mxu0 %v746
        %v760 = vpop.f32.mrf.mxu0
        %v761 = vadd.f32 0.0, %v760
        %v762 = vpop.f32.mrf.mxu0
        %v763 = vadd.f32 0.0, %v762
        %764 = vdwg.mxu0
        %v765 = vsel %vm350, %v761, -inf
        %766 = vmax.xlane.f32.xlu0 %v765
        %v767 = vpop.xlane.xlu0 %766
        %v768 = vsel %vm350, %v763, -inf
        %769 = vmax.xlane.f32.xlu0 %v768
        %v770 = vpop.xlane.xlu0 %769
        %v771 = vsub.f32 %v761, %v767
        %v772 = vsub.f32 %v763, %v770
        %v773 = vmul.f32 %v771, 1.442695
        %v774 = vpow.pop %v773
        %v775 = vmul.f32 %v772, 1.442695
        %v776 = vpow.pop %v775
        %v777 = vsel %vm350, %v774, 0.0
        %778 = vadd.xlane.f32.xlu0 %v777
        %v779 = vpop.xlane.xlu0 %778
        %v780 = vsel %vm350, %v776, 0.0
        %781 = vadd.xlane.f32.xlu0 %v780
        %v782 = vpop.xlane.xlu0 %781
        %v783 = vpack.c.bf16 %v776, %v774
        %784 = vrot.lane.b32.xlu0 %v326, 40
        %v785 = vpop.permute.xlu0 %784
        %v788 = vsel %vm350, %v783, 0
        %790 = vmatpush.bf16.msra.mxu0 0
        %791 = vmatpush.bf16.msra.mxu0 0
        %792 = vmatpush.bf16.msra.mxu0 0
        %793 = vmatpush.bf16.msra.mxu0 0
        %794 = vmatpush.bf16.msra.mxu0 0
        %795 = vmatpush.bf16.msra.mxu0 0
        %796 = vmatpush.bf16.msra.mxu0 0
        %797 = vmatpush.bf16.msra.mxu0 %v785
        %798 = vmatmul.bf16.gmra.mxu0 %v788
        %v799 = vpop.f32.mrf.mxu0
        %v800 = vadd.f32 0.0, %v799
        %v801 = vpop.f32.mrf.mxu0
        %v802 = vadd.f32 0.0, %v801
        %803 = vdwg.mxu0
        %v804 = vrcp.pop %v779
        %v805 = vrcp.pop %v782
        %v806 = vmul.f32 %v800, %v804
        %v807 = vmul.f32 %v802, %v805
        %v808 = vpack.c.bf16 %v806, %v806
        %v809 = vpack.c.bf16 %v807, %v807
        %810 = vrot.lane.b32.xlu0 %v326, 100
        %v811 = vpop.permute.xlu0 %810
        %812 = vrot.lane.b32.xlu0 %v326, 68
        %v813 = vpop.permute.xlu0 %812
        %v815 = vsel %vm329, %v811, 0
        %v818 = vsel %vm329, %v813, 0
        %820 = vmatpush.bf16.xpose.msra.mxu0 0
        %821 = vmatpush.bf16.xpose.msra.mxu0 0
        %822 = vmatpush.bf16.xpose.msra.mxu0 0
        %823 = vmatpush.bf16.xpose.msra.mxu0 0
        %824 = vmatpush.bf16.xpose.msra.mxu0 0
        %825 = vmatpush.bf16.xpose.msra.mxu0 0
        %826 = vmatpush.bf16.xpose.msra.mxu0 0
        %827 = vmatpush.bf16.xpose.msra.mxu0 %v818
        %828 = vmatmul.bf16.gmra.mxu0 %v815
        %v829 = vpop.f32.mrf.mxu0
        %v830 = vadd.f32 0.0, %v829
        %v831 = vpop.f32.mrf.mxu0
        %v832 = vadd.f32 0.0, %v831
        %833 = vdwg.mxu0
        %v834 = vsel %vm350, %v830, -inf
        %835 = vmax.xlane.f32.xlu0 %v834
        %v836 = vpop.xlane.xlu0 %835
        %v837 = vsel %vm350, %v832, -inf
        %838 = vmax.xlane.f32.xlu0 %v837
        %v839 = vpop.xlane.xlu0 %838
        %v840 = vsub.f32 %v830, %v836
        %v841 = vsub.f32 %v832, %v839
        %v842 = vmul.f32 %v840, 1.442695
        %v843 = vpow.pop %v842
        %v844 = vmul.f32 %v841, 1.442695
        %v845 = vpow.pop %v844
        %v846 = vsel %vm350, %v843, 0.0
        %847 = vadd.xlane.f32.xlu0 %v846
        %v848 = vpop.xlane.xlu0 %847
        %v849 = vsel %vm350, %v845, 0.0
        %850 = vadd.xlane.f32.xlu0 %v849
        %v851 = vpop.xlane.xlu0 %850
        %v852 = vpack.c.bf16 %v845, %v843
        %853 = vrot.lane.b32.xlu0 %v326, 36
        %v854 = vpop.permute.xlu0 %853
        %v857 = vsel %vm350, %v852, 0
        %859 = vmatpush.bf16.msra.mxu0 0
        %860 = vmatpush.bf16.msra.mxu0 0
        %861 = vmatpush.bf16.msra.mxu0 0
        %862 = vmatpush.bf16.msra.mxu0 0
        %863 = vmatpush.bf16.msra.mxu0 0
        %864 = vmatpush.bf16.msra.mxu0 0
        %865 = vmatpush.bf16.msra.mxu0 0
        %866 = vmatpush.bf16.msra.mxu0 %v854
        %867 = vmatmul.bf16.gmra.mxu0 %v857
        %v868 = vpop.f32.mrf.mxu0
        %v869 = vadd.f32 0.0, %v868
        %v870 = vpop.f32.mrf.mxu0
        %v871 = vadd.f32 0.0, %v870
        %872 = vdwg.mxu0
        %v873 = vrcp.pop %v848
        %v874 = vrcp.pop %v851
        %v875 = vmul.f32 %v869, %v873
        %v876 = vmul.f32 %v871, %v874
        %v877 = vpack.c.bf16 %v875, %v875
        %v878 = vpack.c.bf16 %v876, %v876
        %v881 = vunpack.c.l.b16 %v394
        %v882 = vunpack.c.l.b16 %v395
        %v883 = vpack.c.b16 %v882, %v881
        %v886 = vunpack.c.l.b16 %v463
        %v887 = vunpack.c.l.b16 %v464
        %v888 = vpack.c.b16 %v887, %v886
        %889 = vrot.lane.b32.xlu0 %v888, 4
        %v890 = vpop.permute.xlu0 %889
        %v893 = vunpack.c.l.b16 %v532
        %v894 = vunpack.c.l.b16 %v533
        %v895 = vpack.c.b16 %v894, %v893
        %896 = vrot.lane.b32.xlu0 %v895, 8
        %v897 = vpop.permute.xlu0 %896
        %v900 = vunpack.c.l.b16 %v601
        %v901 = vunpack.c.l.b16 %v602
        %v902 = vpack.c.b16 %v901, %v900
        %903 = vrot.lane.b32.xlu0 %v902, 12
        %v904 = vpop.permute.xlu0 %903
        %v907 = vunpack.c.l.b16 %v670
        %v908 = vunpack.c.l.b16 %v671
        %v909 = vpack.c.b16 %v908, %v907
        %910 = vrot.lane.b32.xlu0 %v909, 16
        %v911 = vpop.permute.xlu0 %910
        %v914 = vunpack.c.l.b16 %v739
        %v915 = vunpack.c.l.b16 %v740
        %v916 = vpack.c.b16 %v915, %v914
        %917 = vrot.lane.b32.xlu0 %v916, 20
        %v918 = vpop.permute.xlu0 %917
        %v921 = vunpack.c.l.b16 %v808
        %v922 = vunpack.c.l.b16 %v809
        %v923 = vpack.c.b16 %v922, %v921
        %924 = vrot.lane.b32.xlu0 %v923, 24
        %v925 = vpop.permute.xlu0 %924
        %v928 = vunpack.c.l.b16 %v877
        %v929 = vunpack.c.l.b16 %v878
        %v930 = vpack.c.b16 %v929, %v928
        %931 = vrot.lane.b32.xlu0 %v930, 28
        %v932 = vpop.permute.xlu0 %931
        %v935 = vsel %vm329, %v883, %v890
        %vm936 = vcmask 64512
        %v938 = vsel %vm936, %v935, %v897
        %vm939 = vcmask 97280
        %v941 = vsel %vm939, %v938, %v904
        %v943 = vsel %vm350, %v941, %v911
        %vm944 = vcmask 162816
        %v946 = vsel %vm944, %v943, %v918
        %vm947 = vcmask 195584
        %v949 = vsel %vm947, %v946, %v925
        %vm950 = vcmask 228352
        %v952 = vsel %vm950, %v949, %v932
        %v953 = vld [vmem:[#allocation7] sm:$0xf]
        %v954 = vld [vmem:[#allocation7 + $0x4] sm:$0xf]
        %v955 = vld [vmem:[#allocation7 + $0x8] sm:$0xf]
        %v956 = vld [vmem:[#allocation7 + $0xc] sm:$0xf]
        %v957 = vld [vmem:[%s4] sm:$0x1]
        %v959 = vperm.slane %v957, 0
        %v965 = vunpack.c.l.b16 %v953
        %v966 = vunpack.c.l.b16 %v954
        %v967 = vunpack.c.l.b16 %v955
        %v968 = vunpack.c.l.b16 %v956
        %v969 = vpack.c.b16 %v966, %v965
        %v970 = vpack.c.b16 %v968, %v967
        %v973 = vsel %vm302, %v952, 0
        %975 = vmatpush.bf16.msra.mxu0 0
        %976 = vmatpush.bf16.msra.mxu0 0
        %977 = vmatpush.bf16.msra.mxu0 0
        %978 = vmatpush.bf16.msra.mxu0 0
        %979 = vmatpush.bf16.msra.mxu0 0
        %980 = vmatpush.bf16.msra.mxu0 0
        %981 = vmatpush.bf16.msra.mxu0 %v970
        %982 = vmatpush.bf16.msra.mxu0 %v969
        %983 = vmatmul.bf16.gmra.mxu0 %v973
        %v984 = vpop.f32.mrf.mxu0
        %v985 = vadd.f32 %v959, %v984
        %v986 = vpop.f32.mrf.mxu0
        %v987 = vadd.f32 %v959, %v986
        %988 = vdwg.mxu0
        %v989 = vadd.f32 %v985, %v279
        %v990 = vadd.f32 %v987, %v280
        %991 = vst.msk [vmem:[%s277] sm:$0xff] %vm302, %v989
        %992 = vst.msk [vmem:[%s277 + $0x8] sm:$0xff] %vm302, %v990
        %s993 = sand.u32 %s141, 1
        %s994 = scalar_lea.sflag [#allocation4], %s993
        %s995 = sand.u32 %s141, 1
        %s996 = smul.addr %s995, 16
        %s997 = scalar_lea.vmem [#allocation8], %s996
        // Predicated region
        $region53: #{tpu_custom_call.1} parent=39 // pred_check
          %p998 = pneg %p151
        $region54: #{tpu_custom_call.1} parent=39 // pred_check_branch
          %1000 = sbr.rel (%p998) target = $region56
        $region55: #{tpu_custom_call.1} parent=39 // pred_region
          %1002 = vsyncadd %s994, 0
          %s1003 = smul.addr %s23, 2
          %s1004 = smul.addr %s1003, 8
          %s1005 = scalar_lea.hbm %s5, %s1004
          %s1006 = sshll.u32 %s997, 4
          %s1007 = int_to_ptr.vmem [resolvable:$true] %s1006
          %s1008 = sshll.u32 %s1005, 4
          %s1009 = int_to_ptr.hbm [resolvable:$true] %s1008
          %1014 = dma.vmem_to_hbm [thread:$0]  %s1007, 256, %s1009, %s994, 128, 128, 8
        $region56: #{tpu_custom_call.1} parent=39 // pred_fallthru
          _
      $region40: #{tpu_custom_call.1} parent=5 // pred_fallthru
        _
      %p1015 = scmp.le.s32.totalorder 2, %s18
      // Predicated region
      $region57: #{tpu_custom_call.1} parent=5 // pred_check
        %p1016 = pneg %p1015
      $region58: #{tpu_custom_call.1} parent=5 // pred_check_branch
        %1018 = sbr.rel (%p1016) target = $region60
      $region59: #{tpu_custom_call.1} parent=5 // pred_region
        %s1019 = ssub.s32 %s18, 2
        // Predicated region
        $region61: #{tpu_custom_call.1} parent=59 // pred_check
          %p1020 = pneg %p157
        $region62: #{tpu_custom_call.1} parent=59 // pred_check_branch
          %1022 = sbr.rel (%p1020) target = $region64
        $region63: #{tpu_custom_call.1} parent=59 // pred_region
          %s1023 = sand.u32 %s142, 1
          %s1024 = scalar_lea.sflag [#allocation4], %s1023
          %s1025 = sand.u32 %s142, 1
          %s1026 = smul.addr %s1025, 16
          %s1027 = scalar_lea.vmem [#allocation8], %s1026
          %1029 = dma.done %s1024, 256
        $region64: #{tpu_custom_call.1} parent=59 // pred_fallthru
          _
      $region60: #{tpu_custom_call.1} parent=5 // pred_fallthru
        _
    $region6: #{tpu_custom_call.1} parent=1 // loop_footer
      %s22 = sadd.s32 1, %s18
    $region7: #{tpu_custom_call.1} parent=1 // loop_footer_branch
      %17 = sbr.rel target = $region3
    $region8: #{tpu_custom_call.1} parent=1 // loop_exit
      _
    %1030 = vsyncpa [#allocation3], 1
    %s1031 = scalar_lea.sflag [#allocation3], 1
    %1032 = vsyncpa %s1031, 1
    %1033 = vsyncpa [#allocation6], 1
    %1034 = vsyncpa [#allocation4], 1
    %s1035 = scalar_lea.sflag [#allocation4], 1
    %1036 = vsyncpa %s1035, 1

</llo_original>
